<compile_context>
chip_gen: v7x
topology: tpu7x:2x2x1
jax: 0.10.0
libtpu: 0.0.40
codegen_flags: <defaults>
</compile_context>

<pallas_src>
import jax
import jax.numpy as jnp
from jax.experimental import pallas as pl
from jax.experimental.pallas import tpu as pltpu

MAX_TILE_N = 8192   # batch rows per grid step; double-buffered tiles ~2.6 MiB


def _round_up(x, m):
    return (x + m - 1) // m * m


def _mlp_softmax_kernel(x_ref, w1_ref, b1_ref, w2_ref, b2_ref, o_ref):
    # fc1: cast x to bf16 in-kernel (MXU-native operands), accumulate in f32.
    x = x_ref[...].astype(jnp.bfloat16)
    h = jnp.dot(x, w1_ref[...], preferred_element_type=jnp.float32)
    h = jnp.maximum(h + b1_ref[...], 0.0)                      # bias + ReLU (f32, VPU)

    # fc2: bf16 operands, f32 accumulation; output stays narrow (output_dim lanes).
    logits = jnp.dot(h.astype(jnp.bfloat16), w2_ref[...],
                     preferred_element_type=jnp.float32)
    logits = logits + b2_ref[...]

    # Numerically-stable softmax over the class (lane) axis.
    m = jnp.max(logits, axis=1, keepdims=True)
    e = jnp.exp(logits - m)
    denom = jnp.sum(e, axis=1, keepdims=True)
    o_ref[...] = (e * pl.reciprocal(denom)).astype(o_ref.dtype)


@jax.jit
def cell_type_predictor(x, w1, b1, w2, b2):
    """x: (N, input_dim) f32. w1: (in, hid), b1: (1, hid), w2: (hid, out), b2: (1, out).
    Returns softmax probabilities (N, output_dim) f32."""
    n, input_dim = x.shape
    hidden_dim = w1.shape[1]
    output_dim = w2.shape[1]

    # Weights cast once (tiny, constant across all grid steps / resident in VMEM).
    w1b = w1.astype(jnp.bfloat16)
    w2b = w2.astype(jnp.bfloat16)

    # Balanced batch tiling: split N into roughly-equal, 8-row-aligned tiles so the
    # last grid step isn't a tiny remainder (matters for the 2-TC split on v7x).
    num_tiles = pl.cdiv(n, MAX_TILE_N)
    tile_n = min(MAX_TILE_N, _round_up(pl.cdiv(n, num_tiles), 8))
    grid = (pl.cdiv(n, tile_n),)   # ragged last block handled by Pallas masking

    flops = 2 * n * (input_dim * hidden_dim + hidden_dim * output_dim)
    bytes_accessed = (x.size * 4 + w1b.size * 2 + b1.size * 4
                      + w2b.size * 2 + b2.size * 4 + n * output_dim * 4)
    cost = pl.CostEstimate(flops=flops,
                           transcendentals=n * output_dim,
                           bytes_accessed=bytes_accessed)

    return pl.pallas_call(
        _mlp_softmax_kernel,
        out_shape=jax.ShapeDtypeStruct((n, output_dim), jnp.float32),
        grid=grid,
        in_specs=[
            pl.BlockSpec((tile_n, input_dim), lambda i: (i, 0)),      # x tile (streamed, f32)
            pl.BlockSpec((input_dim, hidden_dim), lambda i: (0, 0)),  # W1 (VMEM-resident bf16)
            pl.BlockSpec((1, hidden_dim), lambda i: (0, 0)),          # b1 (f32)
            pl.BlockSpec((hidden_dim, output_dim), lambda i: (0, 0)), # W2 (bf16, unpadded)
            pl.BlockSpec((1, output_dim), lambda i: (0, 0)),          # b2 (f32, unpadded)
        ],
        out_specs=pl.BlockSpec((tile_n, output_dim), lambda i: (i, 0)),  # narrow output
        compiler_params=pltpu.CompilerParams(
            dimension_semantics=("parallel",)),   # batch axis -> both TCs on v7x
        cost_estimate=cost,
    )(x, w1b, b1, w2b, b2)


def init_params(key, input_dim, hidden_dim, output_dim):
    """Deterministic init mimicking nn.Linear's U(-1/sqrt(fan_in), 1/sqrt(fan_in)).
    Weights stored (in, out) so the kernel computes x @ W (PyTorch stores (out, in))."""
    k1, k2, k3, k4 = jax.random.split(key, 4)
    bound1 = 1.0 / jnp.sqrt(float(input_dim))
    bound2 = 1.0 / jnp.sqrt(float(hidden_dim))
    w1 = jax.random.uniform(k1, (input_dim, hidden_dim), jnp.float32, -bound1, bound1)
    b1 = jax.random.uniform(k2, (1, hidden_dim), jnp.float32, -bound1, bound1)
    w2 = jax.random.uniform(k3, (hidden_dim, output_dim), jnp.float32, -bound2, bound2)
    b2 = jax.random.uniform(k4, (1, output_dim), jnp.float32, -bound2, bound2)
    return w1, b1, w2, b2


if __name__ == "__main__":
    key = jax.random.PRNGKey(0)
    batch, input_dim, hidden_dim, output_dim = 8, 32, 64, 10

    kx, kp = jax.random.split(key)
    x = jax.random.normal(kx, (batch, input_dim), jnp.float32)
    w1, b1, w2, b2 = init_params(kp, input_dim, hidden_dim, output_dim)

    out = cell_type_predictor(x, w1, b1, w2, b2)
    out = jax.block_until_ready(out)
    assert out.shape == (batch, output_dim)

    # Reference with the same bf16 matmul operands / f32 accumulation as the kernel.
    xb = x.astype(jnp.bfloat16)
    h_ref = jnp.maximum(
        jnp.dot(xb, w1.astype(jnp.bfloat16), preferred_element_type=jnp.float32) + b1, 0.0)
    logits_ref = jnp.dot(h_ref.astype(jnp.bfloat16), w2.astype(jnp.bfloat16),
                         preferred_element_type=jnp.float32) + b2
    ref_bf16 = jax.nn.softmax(logits_ref, axis=1)
    assert jnp.allclose(out, ref_bf16, atol=1e-4, rtol=1e-4)

    # Full-f32 PyTorch-equivalent reference (loose tolerance: bf16 matmul operands).
    h_f32 = jnp.maximum(x @ w1 + b1, 0.0)
    ref_f32 = jax.nn.softmax(h_f32 @ w2 + b2, axis=1)
    assert jnp.allclose(out, ref_f32, atol=5e-2, rtol=5e-2)

    # Softmax rows must sum to 1 (exact reciprocal keeps this within 1e-5).
    assert jnp.allclose(jnp.sum(out, axis=1), 1.0, atol=1e-5)

    print("KERNEL_OK")
</pallas_src>

<mosaic_0001>
module attributes {stable_mosaic.version = 11 : i64} {
  func.func @_mlp_softmax_kernel(%arg0: i32, %arg1: memref<8x32xf32, #tpu.memory_space<vmem>>, %arg2: memref<32x64xbf16, #tpu.memory_space<vmem>>, %arg3: memref<1x64xf32, #tpu.memory_space<vmem>>, %arg4: memref<64x10xbf16, #tpu.memory_space<vmem>>, %arg5: memref<1x10xf32, #tpu.memory_space<vmem>>, %arg6: memref<8x10xf32, #tpu.memory_space<vmem>>) attributes {dimension_semantics = [#tpu.dimension_semantics<parallel>], iteration_bounds = array<i64: 1>, scalar_prefetch = 0 : i64, scratch_operands = 0 : i64, tpu.core_type = #tpu.core_type<tc>, window_params = [{transform_indices = @transform_0, window_bounds = array<i64: 8, 32>}, {pipeline_mode = #tpu.pipeline_mode<synchronous>, transform_indices = @transform_1, window_bounds = array<i64: 32, 64>}, {pipeline_mode = #tpu.pipeline_mode<synchronous>, transform_indices = @transform_2, window_bounds = array<i64: 1, 64>}, {pipeline_mode = #tpu.pipeline_mode<synchronous>, transform_indices = @transform_3, window_bounds = array<i64: 64, 10>}, {pipeline_mode = #tpu.pipeline_mode<synchronous>, transform_indices = @transform_4, window_bounds = array<i64: 1, 10>}, {transform_indices = @transform_5, window_bounds = array<i64: 8, 10>}]} {
    %c0 = arith.constant 0 : index
    %c0_0 = arith.constant 0 : index
    %0 = vector.load %arg1[%c0, %c0_0] : memref<8x32xf32, #tpu.memory_space<vmem>>, vector<8x32xf32>
    %1 = arith.truncf %0 : vector<8x32xf32> to vector<8x32xbf16>
    %c0_1 = arith.constant 0 : index
    %c0_2 = arith.constant 0 : index
    %2 = vector.load %arg2[%c0_1, %c0_2] : memref<32x64xbf16, #tpu.memory_space<vmem>>, vector<32x64xbf16>
    %cst = arith.constant dense<0.000000e+00> : vector<8x64xf32>
    %3 = tpu.matmul %1, %2, %cst {dimension_numbers = #tpu.dot_dimension_numbers<[1], [0], [0], [1], [0, 0, 1, 1], [], []>} : vector<8x32xbf16>, vector<32x64xbf16>, vector<8x64xf32> -> vector<8x64xf32>
    %c0_3 = arith.constant 0 : index
    %c0_4 = arith.constant 0 : index
    %4 = vector.load %arg3[%c0_3, %c0_4] : memref<1x64xf32, #tpu.memory_space<vmem>>, vector<1x64xf32>
    %5 = vector.broadcast %4 : vector<1x64xf32> to vector<8x64xf32>
    %6 = arith.addf %3, %5 : vector<8x64xf32>
    %cst_5 = arith.constant 0.000000e+00 : f32
    %7 = vector.broadcast %cst_5 : f32 to vector<8x64xf32>
    %8 = arith.maximumf %6, %7 : vector<8x64xf32>
    %9 = arith.truncf %8 : vector<8x64xf32> to vector<8x64xbf16>
    %c0_6 = arith.constant 0 : index
    %c0_7 = arith.constant 0 : index
    %10 = vector.load %arg4[%c0_6, %c0_7] : memref<64x10xbf16, #tpu.memory_space<vmem>>, vector<64x10xbf16>
    %cst_8 = arith.constant dense<0.000000e+00> : vector<8x10xf32>
    %11 = tpu.matmul %9, %10, %cst_8 {dimension_numbers = #tpu.dot_dimension_numbers<[1], [0], [0], [1], [0, 0, 1, 1], [], []>} : vector<8x64xbf16>, vector<64x10xbf16>, vector<8x10xf32> -> vector<8x10xf32>
    %c0_9 = arith.constant 0 : index
    %c0_10 = arith.constant 0 : index
    %12 = vector.load %arg5[%c0_9, %c0_10] : memref<1x10xf32, #tpu.memory_space<vmem>>, vector<1x10xf32>
    %13 = vector.broadcast %12 : vector<1x10xf32> to vector<8x10xf32>
    %14 = arith.addf %11, %13 : vector<8x10xf32>
    %cst_11 = arith.constant dense<0xFF800000> : vector<8xf32>
    %15 = vector.multi_reduction <maximumf>, %14, %cst_11 [1] : vector<8x10xf32> to vector<8xf32>
    %16 = vector.shape_cast %15 : vector<8xf32> to vector<8x1xf32>
    %17 = vector.broadcast %16 : vector<8x1xf32> to vector<8x10xf32>
    %18 = arith.subf %14, %17 : vector<8x10xf32>
    %19 = math.exp %18 : vector<8x10xf32>
    %cst_12 = arith.constant dense<0.000000e+00> : vector<8xf32>
    %20 = vector.multi_reduction <add>, %19, %cst_12 [1] : vector<8x10xf32> to vector<8xf32>
    %21 = vector.shape_cast %20 : vector<8xf32> to vector<8x1xf32>
    %22 = tpu.reciprocal %21 : vector<8x1xf32> -> vector<8x1xf32>
    %23 = vector.broadcast %22 : vector<8x1xf32> to vector<8x10xf32>
    %24 = arith.mulf %19, %23 : vector<8x10xf32>
    %c0_13 = arith.constant 0 : index
    %c0_14 = arith.constant 0 : index
    %25 = vector.load %arg6[%c0_13, %c0_14] : memref<8x10xf32, #tpu.memory_space<vmem>>, vector<8x10xf32>
    tpu.vector_store %arg6[%c0_13, %c0_14], %24 {strides = array<i32>} : memref<8x10xf32, #tpu.memory_space<vmem>>, vector<8x10xf32>,
    return
  }
  func.func @transform_0(%arg0: i32) -> (i32, i32) {
    %c0_i32 = arith.constant 0 : i32
    %c0_i32_0 = arith.constant 0 : i32
    return %arg0, %c0_i32 : i32, i32
  }
  func.func @transform_1(%arg0: i32) -> (i32, i32) {
    %c0_i32 = arith.constant 0 : i32
    %c0_i32_0 = arith.constant 0 : i32
    %c0_i32_1 = arith.constant 0 : i32
    return %c0_i32, %c0_i32_0 : i32, i32
  }
  func.func @transform_2(%arg0: i32) -> (i32, i32) {
    %c0_i32 = arith.constant 0 : i32
    %c0_i32_0 = arith.constant 0 : i32
    %c0_i32_1 = arith.constant 0 : i32
    return %c0_i32, %c0_i32_0 : i32, i32
  }
  func.func @transform_3(%arg0: i32) -> (i32, i32) {
    %c0_i32 = arith.constant 0 : i32
    %c0_i32_0 = arith.constant 0 : i32
    %c0_i32_1 = arith.constant 0 : i32
    return %c0_i32, %c0_i32_0 : i32, i32
  }
  func.func @transform_4(%arg0: i32) -> (i32, i32) {
    %c0_i32 = arith.constant 0 : i32
    %c0_i32_0 = arith.constant 0 : i32
    %c0_i32_1 = arith.constant 0 : i32
    return %c0_i32, %c0_i32_0 : i32, i32
  }
  func.func @transform_5(%arg0: i32) -> (i32, i32) {
    %c0_i32 = arith.constant 0 : i32
    %c0_i32_0 = arith.constant 0 : i32
    return %arg0, %c0_i32 : i32, i32
  }
}

</mosaic_0001>

<llo_original>
// kernel: cell_type_predictor.1
$region0: #{cell_type_predictor.1}
  #allocation0 [shape = 'u32[]', space=smem, size = 0x4, offset = 0x4, fixed_abs, tag = 'smem constant byte address 0x4 - core index']
  #allocation1 [shape = 'u32[144,128]{1,0:T(1,128)}', space=vmem, size = 0x12000, scoped, tag = 'internal scratch']
  %s0 = inlined_call_operand.vmem [shape: f32[8,32], index: 0, kind: input, shape index: {}]
  %s1 = inlined_call_operand.vmem [shape: bf16[32,64], index: 1, kind: input, shape index: {}]
  %s2 = inlined_call_operand.vmem [shape: f32[1,64], index: 2, kind: input, shape index: {}]
  %s3 = inlined_call_operand.vmem [shape: bf16[64,10], index: 3, kind: input, shape index: {}]
  %s4 = inlined_call_operand.vmem [shape: f32[1,10], index: 4, kind: input, shape index: {}]
  %s5 = inlined_call_operand.hbm [shape: f32[8,10], index: 5, kind: output, shape index: {}]
  %s6 = sld [smem:[#allocation0]]
  $region30: #{cell_type_predictor.1} parent=0
    _
  %s8 = ssub.s32 1, %s6
  %s9 = scalar_select 0, %s8, %s6
  $region1: #{cell_type_predictor.1} parent=0
    #allocation2 [shape = 'u8[4096]{0}', space=vmem, size = 0x1000, scoped, tag = 'output window, operand 0, single buffered']
    #allocation3 [shape = 's32[1]{0}', space=sflag, size = 0x4, scoped, tag = 'scoped memory for cell_type_predictor.1']
    %10 = vsyncpa [#allocation3], 0
    // Predicated region
    $region2: #{cell_type_predictor.1} parent=1 // pred_check
      _
    $region3: #{cell_type_predictor.1} parent=1 // pred_check_branch
      %12 = sbr.rel (0) target = $region5
    $region4: #{cell_type_predictor.1} parent=1 // pred_region
      _
    $region5: #{cell_type_predictor.1} parent=1 // pred_fallthru
      _
    // Predicated region
    $region6: #{cell_type_predictor.1} parent=1 // pred_check
      _
    $region7: #{cell_type_predictor.1} parent=1 // pred_check_branch
      %14 = sbr.rel (0) target = $region9
    $region8: #{cell_type_predictor.1} parent=1 // pred_region
      _
    $region9: #{cell_type_predictor.1} parent=1 // pred_fallthru
      _
    // Predicated region
    $region10: #{cell_type_predictor.1} parent=1 // pred_check
      _
    $region11: #{cell_type_predictor.1} parent=1 // pred_check_branch
      %16 = sbr.rel (0) target = $region13
    $region12: #{cell_type_predictor.1} parent=1 // pred_region
      _
    $region13: #{cell_type_predictor.1} parent=1 // pred_fallthru
      _
    // Predicated region
    $region14: #{cell_type_predictor.1} parent=1 // pred_check
      _
    $region15: #{cell_type_predictor.1} parent=1 // pred_check_branch
      %18 = sbr.rel (0) target = $region17
    $region16: #{cell_type_predictor.1} parent=1 // pred_region
      _
    $region17: #{cell_type_predictor.1} parent=1 // pred_fallthru
      _
    // Predicated region
    $region18: #{cell_type_predictor.1} parent=1 // pred_check
      _
    $region19: #{cell_type_predictor.1} parent=1 // pred_check_branch
      %20 = sbr.rel (0) target = $region21
    $region20: #{cell_type_predictor.1} parent=1 // pred_region
      _
    $region21: #{cell_type_predictor.1} parent=1 // pred_fallthru
      _
    %v22 = vld [vmem:[%s0] sm:$0xff]
    %v23 = vpack.c.bf16 %v22, %v22
    %v24 = vld [vmem:[%s1] sm:$0xf]
    %v25 = vld [vmem:[%s1 + $0x4] sm:$0xf]
    %v26 = vld [vmem:[%s1 + $0x8] sm:$0xf]
    %v27 = vld [vmem:[%s1 + $0xc] sm:$0xf]
    %v28 = vld [vmem:[%s2] sm:$0x1]
    %v30 = vlaneseq
    %v31 = vshrl.u32 %v30, 7
    %v32 = vsub.s32 0, %v31
    %v33 = vrot.slane %v28, %v32
    %v39 = vunpack.c.l.b16 %v24
    %v40 = vunpack.c.l.b16 %v25
    %v41 = vunpack.c.l.b16 %v26
    %v42 = vunpack.c.l.b16 %v27
    %v43 = vpack.c.b16 %v40, %v39
    %v44 = vpack.c.b16 %v42, %v41
    %vm47 = vcmask 261120
    %v49 = vsel %vm47, %v23, 0
    %51 = vmatprep.subr.bf16.mxu0 0
    %52 = vmatpush1.bf16.msra.mxu0 %v43
    %53 = vmatprep.subr.bf16.mxu0 0
    %54 = vmatpush1.bf16.msra.mxu0 %v44
    %55 = vmatprep.subr.bf16.mxu0 0
    %56 = vmatpush1.bf16.msra.mxu0 0
    %57 = vmatprep.subr.bf16.mxu0 0
    %58 = vmatpush1.bf16.msra.mxu0 0
    %59 = vmatprep.subr.bf16.mxu0 0
    %60 = vmatpush1.bf16.msra.mxu0 0
    %61 = vmatprep.subr.bf16.mxu0 0
    %62 = vmatpush1.bf16.msra.mxu0 0
    %63 = vmatprep.subr.bf16.mxu0 0
    %64 = vmatpush1.bf16.msra.mxu0 0
    %65 = vmatprep.subr.bf16.mxu0 0
    %66 = vmatpush1.bf16.msra.mxu0 0
    %67 = vmatprep.subr.bf16.mxu0 0
    %68 = vmatpush1.bf16.msra.mxu0 0
    %69 = vmatprep.subr.bf16.mxu0 0
    %70 = vmatpush1.bf16.msra.mxu0 0
    %71 = vmatprep.subr.bf16.mxu0 0
    %72 = vmatpush1.bf16.msra.mxu0 0
    %73 = vmatprep.subr.bf16.mxu0 0
    %74 = vmatpush1.bf16.msra.mxu0 0
    %75 = vmatprep.subr.bf16.mxu0 0
    %76 = vmatpush1.bf16.msra.mxu0 0
    %77 = vmatprep.subr.bf16.mxu0 0
    %78 = vmatpush1.bf16.msra.mxu0 0
    %79 = vmatprep.subr.bf16.mxu0 0
    %80 = vmatpush1.bf16.msra.mxu0 0
    %81 = vmatprep.subr.bf16.mxu0 0
    %82 = vmatpush1.bf16.msra.mxu0 0
    %83 = vmatprep.mubr.bf16.mxu0 0
    %84 = vmatmul.mubr.bf16.gmra.mrb[0].mxu0 %v49
    %v85 = vpop.f32.mrb[0].mxu0
    %v86 = vadd.f32 %v33, %v85
    %v87 = vpop.f32.mrb[0].mxu0
    %v88 = vpop.f32.mrb[0].mxu0
    %v89 = vpop.f32.mrb[0].mxu0
    %90 = vdwg.mxu0
    %v91 = vmax.f32 %v86, 0.0
    %v92 = vpack.c.bf16 %v91, %v91
    %v93 = vld [vmem:[%s3] sm:$0xf]
    %v94 = vld [vmem:[%s3 + $0x4] sm:$0xf]
    %v95 = vld [vmem:[%s3 + $0x8] sm:$0xf]
    %v96 = vld [vmem:[%s3 + $0xc] sm:$0xf]
    %v97 = vld [vmem:[%s3 + $0x10] sm:$0xf]
    %v98 = vld [vmem:[%s3 + $0x14] sm:$0xf]
    %v99 = vld [vmem:[%s3 + $0x18] sm:$0xf]
    %v100 = vld [vmem:[%s3 + $0x1c] sm:$0xf]
    %v101 = vld [vmem:[%s4] sm:$0x1]
    %v103 = vlaneseq
    %v104 = vshrl.u32 %v103, 7
    %v105 = vsub.s32 0, %v104
    %v106 = vrot.slane %v101, %v105
    %v116 = vunpack.c.l.b16 %v93
    %v117 = vunpack.c.l.b16 %v94
    %v118 = vunpack.c.l.b16 %v95
    %v119 = vunpack.c.l.b16 %v96
    %v120 = vunpack.c.l.b16 %v97
    %v121 = vunpack.c.l.b16 %v98
    %v122 = vunpack.c.l.b16 %v99
    %v123 = vunpack.c.l.b16 %v100
    %v124 = vpack.c.b16 %v117, %v116
    %v125 = vpack.c.b16 %v119, %v118
    %v126 = vpack.c.b16 %v121, %v120
    %v127 = vpack.c.b16 %v123, %v122
    %vm132 = vcmask 523264
    %v134 = vsel %vm132, %v92, 0
    %136 = vmatprep.subr.bf16.mxu0 0
    %137 = vmatpush1.bf16.msra.mxu0 %v124
    %138 = vmatprep.subr.bf16.mxu0 0
    %139 = vmatpush1.bf16.msra.mxu0 %v125
    %140 = vmatprep.subr.bf16.mxu0 0
    %141 = vmatpush1.bf16.msra.mxu0 %v126
    %142 = vmatprep.subr.bf16.mxu0 0
    %143 = vmatpush1.bf16.msra.mxu0 %v127
    %144 = vmatprep.subr.bf16.mxu0 0
    %145 = vmatpush1.bf16.msra.mxu0 0
    %146 = vmatprep.subr.bf16.mxu0 0
    %147 = vmatpush1.bf16.msra.mxu0 0
    %148 = vmatprep.subr.bf16.mxu0 0
    %149 = vmatpush1.bf16.msra.mxu0 0
    %150 = vmatprep.subr.bf16.mxu0 0
    %151 = vmatpush1.bf16.msra.mxu0 0
    %152 = vmatprep.subr.bf16.mxu0 0
    %153 = vmatpush1.bf16.msra.mxu0 0
    %154 = vmatprep.subr.bf16.mxu0 0
    %155 = vmatpush1.bf16.msra.mxu0 0
    %156 = vmatprep.subr.bf16.mxu0 0
    %157 = vmatpush1.bf16.msra.mxu0 0
    %158 = vmatprep.subr.bf16.mxu0 0
    %159 = vmatpush1.bf16.msra.mxu0 0
    %160 = vmatprep.subr.bf16.mxu0 0
    %161 = vmatpush1.bf16.msra.mxu0 0
    %162 = vmatprep.subr.bf16.mxu0 0
    %163 = vmatpush1.bf16.msra.mxu0 0
    %164 = vmatprep.subr.bf16.mxu0 0
    %165 = vmatpush1.bf16.msra.mxu0 0
    %166 = vmatprep.subr.bf16.mxu0 0
    %167 = vmatpush1.bf16.msra.mxu0 0
    %168 = vmatprep.mubr.bf16.mxu0 0
    %169 = vmatmul.mubr.bf16.gmra.mrb[0].mxu0 %v134
    %v170 = vpop.f32.mrb[0].mxu0
    %v171 = vadd.f32 %v106, %v170
    %v172 = vpop.f32.mrb[0].mxu0
    %v173 = vpop.f32.mrb[0].mxu0
    %v174 = vpop.f32.mrb[0].mxu0
    %175 = vdwg.mxu0
    %vm176 = vcmask 80896
    %v177 = vsel %vm176, %v171, -inf
    %178 = vmax.xlane.f32.xlu0 %v177
    %v179 = vpop.xlane.xlu0 %178
    %v180 = vsub.f32 %v171, %v179
    %v181 = vmul.f32 %v180, 1.442695
    %v182 = vpow.pop %v181
    %v183 = vsel %vm176, %v182, 0.0
    %184 = vadd.xlane.f32.xlu0 %v183
    %v185 = vpop.xlane.xlu0 %184
    %v186 = vrcp.pop %v185
    %v187 = vmul.f32 %v182, %v186
    %188 = vst.msk [vmem:[#allocation2] sm:$0xff] %vm176, %v187
    // Predicated region
    $region22: #{cell_type_predictor.1} parent=1 // pred_check
      _
    $region23: #{cell_type_predictor.1} parent=1 // pred_check_branch
      %190 = sbr.rel (0) target = $region25
    $region24: #{cell_type_predictor.1} parent=1 // pred_region
      %s192 = ssub.s32 128, 128
      %193 = vsyncadd [#allocation3], %s192
      %s195 = sshll.u32 [#allocation2], 4
      %s196 = int_to_ptr.vmem [resolvable:$true] %s195
      %198 = dma.vmem_to_hbm [thread:$0]  %s196, 128, %s5, [#allocation3]
    $region25: #{cell_type_predictor.1} parent=1 // pred_fallthru
      _
    // Predicated region
    $region26: #{cell_type_predictor.1} parent=1 // pred_check
      _
    $region27: #{cell_type_predictor.1} parent=1 // pred_check_branch
      %200 = sbr.rel (0) target = $region29
    $region28: #{cell_type_predictor.1} parent=1 // pred_region
      %201 = dma.done [#allocation3], 128
    $region29: #{cell_type_predictor.1} parent=1 // pred_fallthru
      _
    %202 = vsyncpa [#allocation3], 1

</llo_original>
